<compile_context>
chip_gen: v7x
topology: tpu7x:2x2x1
jax: 0.10.0
libtpu: 0.0.40
codegen_flags: <defaults>
</compile_context>

<pallas_src>
import functools

import jax
import jax.numpy as jnp
import numpy as np
from jax.experimental import pallas as pl
from jax.experimental.pallas import tpu as pltpu

_NEG = float(np.finfo(np.float32).min)


def _round_up(x, m):
    return (x + m - 1) // m * m


def _mlp_gate(pooled, w1, w2):
    # pooled: (C_pad, 2) = [avg | max]; one fused pair of matmuls instead of
    # two matvec pairs (halves MXU pushes / duplicate weight staging).
    h = jnp.dot(w1, pooled, preferred_element_type=jnp.float32)      # (Cmid, 2)
    h = jnp.maximum(h, 0.0)
    o = jnp.dot(w2, h, preferred_element_type=jnp.float32)           # (C, 2)
    return jax.nn.sigmoid(o[:, 0:1] + o[:, 1:2])                     # (C, 1)


# --------------- single-pass kernel: whole (C_pad, HW_pad) slab per batch ---
def _ca_single_pass_kernel(x_ref, w1_ref, w2_ref, o_ref, *, hw):
    x = x_ref[0]                                       # (c_pad, hw_pad) f32
    hw_pad = x.shape[-1]

    # Mean: padded lanes are zero, so a full-lane sum / true hw is exact.
    avg = jnp.sum(x, axis=-1, keepdims=True) * (1.0 / hw)            # (c_pad, 1)

    if hw != hw_pad:
        lane = jax.lax.broadcasted_iota(jnp.int32, x.shape, 1)
        x_for_max = jnp.where(lane < hw, x, _NEG)
    else:
        x_for_max = x
    mx = jnp.max(x_for_max, axis=-1, keepdims=True)                  # (c_pad, 1)

    pooled = jnp.concatenate([avg, mx], axis=-1)                     # (c_pad, 2)
    gate = _mlp_gate(pooled, w1_ref[...], w2_ref[...])               # (c_pad, 1)
    o_ref[0] = (gate * x).astype(o_ref.dtype)                        # lane-dense store


# --------------- tiled two-pass kernels (v7x / huge slabs) -------------------
def _ca_pool_mlp_kernel(x_ref, w1_ref, w2_ref, gate_ref, sum_acc, max_acc,
                        *, hw, tile):
    k = pl.program_id(1)

    @pl.when(k == 0)
    def _():
        sum_acc[...] = jnp.zeros_like(sum_acc)
        max_acc[...] = jnp.full_like(max_acc, _NEG)

    x = x_ref[0]                                       # (c_pad, tile)
    lane = jax.lax.broadcasted_iota(jnp.int32, x.shape, 1) + k * tile
    valid = lane < hw
    sum_acc[...] += jnp.sum(jnp.where(valid, x, 0.0), axis=-1, keepdims=True)
    max_acc[...] = jnp.maximum(
        max_acc[...],
        jnp.max(jnp.where(valid, x, _NEG), axis=-1, keepdims=True))

    @pl.when(k == pl.num_programs(1) - 1)
    def _():
        avg = sum_acc[...] * (1.0 / hw)
        pooled = jnp.concatenate([avg, max_acc[...]], axis=-1)       # (c_pad, 2)
        gate_ref[0] = _mlp_gate(pooled, w1_ref[...], w2_ref[...])    # (c_pad, 1)


def _ca_scale_kernel(x_ref, gate_ref, o_ref):
    o_ref[0] = (gate_ref[0] * x_ref[0]).astype(o_ref.dtype)


# --------------- wrapper -----------------------------------------------------
def channel_attention(feat, w1, w2, *, force_tiled=False, hw_tile=512):
    """Squeeze-excite channel attention (matches the PyTorch module).

    feat : (N, C, H, W) float32
    w1   : (Cmid, C)  fc1 1x1-conv weight (bias-free, squeezed)
    w2   : (C, Cmid)  fc2 1x1-conv weight (bias-free, squeezed)
    """
    n, c, h, w = feat.shape
    hw = h * w
    cmid = w1.shape[0]

    c_pad = _round_up(c, 8)
    cmid_pad = _round_up(cmid, 8)
    hw_pad128 = _round_up(hw, 128)

    w1_p = jnp.pad(w1.astype(jnp.float32), ((0, cmid_pad - cmid), (0, c_pad - c)))
    w2_p = jnp.pad(w2.astype(jnp.float32), ((0, c_pad - c), (0, cmid_pad - cmid)))
    w_bytes = 4 * (w1_p.size + w2_p.size)

    # VMEM budget for the single-pass whole-slab design: input + output slab,
    # both double-buffered, plus weights and headroom.
    try:
        vmem_cap = pltpu.get_tpu_info().vmem_capacity_bytes
    except Exception:  # conservative fallback (v7x: 64 MiB per TensorCore)
        vmem_cap = 64 << 20
    budget = int(0.75 * vmem_cap)

    slab_bytes = 4 * c_pad * hw_pad128
    single_need = 4 * slab_bytes + 2 * w_bytes + (2 << 20)
    use_tiled = force_tiled or (single_need > budget)

    if not use_tiled:
        # ---- single pass: grid over N, whole slab resident per step --------
        hw_pad = hw_pad128
        x = jnp.pad(feat.reshape(n, c, hw),
                    ((0, 0), (0, c_pad - c), (0, hw_pad - hw)))
        vmem_limit = int(min(max(single_need, 32 << 20), budget))
        out = pl.pallas_call(
            functools.partial(_ca_single_pass_kernel, hw=hw),
            out_shape=jax.ShapeDtypeStruct((n, c_pad, hw_pad), feat.dtype),
            grid_spec=pltpu.PrefetchScalarGridSpec(
                num_scalar_prefetch=0,
                grid=(n,),
                in_specs=[
                    pl.BlockSpec((1, c_pad, hw_pad), lambda i: (i, 0, 0)),
                    pl.BlockSpec((cmid_pad, c_pad), lambda i: (0, 0)),
                    pl.BlockSpec((c_pad, cmid_pad), lambda i: (0, 0)),
                ],
                out_specs=pl.BlockSpec((1, c_pad, hw_pad), lambda i: (i, 0, 0)),
            ),
            compiler_params=pltpu.CompilerParams(
                dimension_semantics=("parallel",),
                vmem_limit_bytes=vmem_limit),
            cost_estimate=pl.CostEstimate(
                flops=int(n * (8 * c_pad * cmid_pad + 3 * c_pad * hw_pad)),
                transcendentals=int(n * c_pad),
                bytes_accessed=int(2 * n * slab_bytes + 2 * w_bytes)),
        )(x, w1_p, w2_p)
    else:
        # ---- tiled two-pass: pool/MLP over HW tiles, then broadcast scale --
        tile = max(128, _round_up(min(hw_tile, hw_pad128), 128))
        hw_pad = _round_up(hw, tile)
        n_tiles = hw_pad // tile
        x = jnp.pad(feat.reshape(n, c, hw),
                    ((0, 0), (0, c_pad - c), (0, hw_pad - hw)))
        tile_bytes = 4 * c_pad * tile
        vmem_limit = int(min(max(6 * tile_bytes + 2 * w_bytes + (4 << 20),
                                 16 << 20), budget))

        gate = pl.pallas_call(
            functools.partial(_ca_pool_mlp_kernel, hw=hw, tile=tile),
            out_shape=jax.ShapeDtypeStruct((n, c_pad, 1), jnp.float32),
            grid_spec=pltpu.PrefetchScalarGridSpec(
                num_scalar_prefetch=0,
                grid=(n, n_tiles),
                in_specs=[
                    pl.BlockSpec((1, c_pad, tile), lambda i, k: (i, 0, k)),
                    pl.BlockSpec((cmid_pad, c_pad), lambda i, k: (0, 0)),
                    pl.BlockSpec((c_pad, cmid_pad), lambda i, k: (0, 0)),
                ],
                out_specs=pl.BlockSpec((1, c_pad, 1), lambda i, k: (i, 0, 0)),
                scratch_shapes=[pltpu.VMEM((c_pad, 1), jnp.float32),
                                pltpu.VMEM((c_pad, 1), jnp.float32)],
            ),
            compiler_params=pltpu.CompilerParams(
                dimension_semantics=("parallel", "arbitrary"),
                vmem_limit_bytes=vmem_limit),
            cost_estimate=pl.CostEstimate(
                flops=int(n * (8 * c_pad * cmid_pad + 2 * c_pad * hw_pad)),
                transcendentals=int(n * c_pad),
                bytes_accessed=int(4 * n * c_pad * hw_pad + 2 * w_bytes)),
        )(x, w1_p, w2_p)

        out = pl.pallas_call(
            _ca_scale_kernel,
            out_shape=jax.ShapeDtypeStruct((n, c_pad, hw_pad), feat.dtype),
            grid_spec=pltpu.PrefetchScalarGridSpec(
                num_scalar_prefetch=0,
                grid=(n, n_tiles),
                in_specs=[
                    pl.BlockSpec((1, c_pad, tile), lambda i, k: (i, 0, k)),
                    pl.BlockSpec((1, c_pad, 1), lambda i, k: (i, 0, 0)),
                ],
                out_specs=pl.BlockSpec((1, c_pad, tile), lambda i, k: (i, 0, k)),
            ),
            compiler_params=pltpu.CompilerParams(
                dimension_semantics=("parallel", "parallel"),
                vmem_limit_bytes=vmem_limit),
            cost_estimate=pl.CostEstimate(
                flops=int(n * c_pad * hw_pad),
                transcendentals=0,
                bytes_accessed=int(8 * n * c_pad * hw_pad)),
        )(x, gate)

    return out[:, :c, :hw].reshape(n, c, h, w)


# --------------- pure-JAX reference (matches the PyTorch forward) ------------
def _reference(feat, w1, w2):
    avg = jnp.mean(feat, axis=(2, 3))                                # (N, C)
    mx = jnp.max(feat, axis=(2, 3))                                  # (N, C)

    def mlp(v):
        h = jnp.maximum(v @ w1.T, 0.0)                               # (N, Cmid)
        return h @ w2.T                                              # (N, C)

    gate = jax.nn.sigmoid(mlp(avg) + mlp(mx))                        # (N, C)
    return gate[:, :, None, None] * feat


if __name__ == "__main__":
    key = jax.random.PRNGKey(0)

    def run_case(n, c, h, w, ratio, case_key, **kw):
        cmid = max(1, c // ratio)
        k_x, k_w1, k_w2 = jax.random.split(case_key, 3)
        feat = jax.random.normal(k_x, (n, c, h, w), dtype=jnp.float32)
        w1 = jax.random.normal(k_w1, (cmid, c), dtype=jnp.float32) / np.sqrt(c)
        w2 = jax.random.normal(k_w2, (c, cmid), dtype=jnp.float32) / np.sqrt(cmid)
        out = jax.block_until_ready(channel_attention(feat, w1, w2, **kw))
        ref = _reference(feat, w1, w2)
        np.testing.assert_allclose(np.asarray(out), np.asarray(ref),
                                   rtol=1e-5, atol=1e-5)

    k1, k2, k3, k4 = jax.random.split(key, 4)
    # 1) Aligned shapes -> single-pass whole-slab path.
    run_case(2, 4, 16, 16, 4, k1)
    # 2) Non-aligned C / HW (real-CNN-like 7x7) -> pad + mask path.
    run_case(2, 5, 7, 7, 4, k2)
    # 3) Forced tiled two-pass path (v7x / huge-slab fallback), 2 HW tiles.
    run_case(2, 4, 16, 16, 4, k3, force_tiled=True, hw_tile=128)
    # 4) Tiled path with a masked spatial tail.
    run_case(2, 5, 7, 7, 4, k4, force_tiled=True, hw_tile=128)

    print("KERNEL_OK")
</pallas_src>

<mosaic_0001>
module attributes {stable_mosaic.version = 11 : i64} {
  func.func @_ca_single_pass_kernel(%arg0: i32, %arg1: memref<1x8x256xf32, #tpu.memory_space<vmem>>, %arg2: memref<8x8xf32, #tpu.memory_space<vmem>>, %arg3: memref<8x8xf32, #tpu.memory_space<vmem>>, %arg4: memref<1x8x256xf32, #tpu.memory_space<vmem>>) attributes {dimension_semantics = [#tpu.dimension_semantics<parallel>], iteration_bounds = array<i64: 2>, scalar_prefetch = 0 : i64, scratch_operands = 0 : i64, tpu.core_type = #tpu.core_type<tc>, window_params = [{transform_indices = @transform_0, window_bounds = array<i64: 1, 8, 256>}, {pipeline_mode = #tpu.pipeline_mode<synchronous>, transform_indices = @transform_1, window_bounds = array<i64: 8, 8>}, {pipeline_mode = #tpu.pipeline_mode<synchronous>, transform_indices = @transform_2, window_bounds = array<i64: 8, 8>}, {transform_indices = @transform_3, window_bounds = array<i64: 1, 8, 256>}]} {
    %c0 = arith.constant 0 : index
    %c0_0 = arith.constant 0 : index
    %c0_1 = arith.constant 0 : index
    %0 = vector.load %arg1[%c0, %c0_0, %c0_1] : memref<1x8x256xf32, #tpu.memory_space<vmem>>, vector<1x8x256xf32>
    %1 = vector.shape_cast %0 : vector<1x8x256xf32> to vector<8x256xf32>
    %cst = arith.constant dense<0.000000e+00> : vector<8xf32>
    %2 = vector.multi_reduction <add>, %1, %cst [1] : vector<8x256xf32> to vector<8xf32>
    %3 = vector.shape_cast %2 : vector<8xf32> to vector<8x1xf32>
    %cst_2 = arith.constant 3.906250e-03 : f32
    %4 = vector.broadcast %cst_2 : f32 to vector<8x1xf32>
    %5 = arith.mulf %3, %4 : vector<8x1xf32>
    %cst_3 = arith.constant dense<0xFF800000> : vector<8xf32>
    %6 = vector.multi_reduction <maximumf>, %1, %cst_3 [1] : vector<8x256xf32> to vector<8xf32>
    %7 = vector.shape_cast %6 : vector<8xf32> to vector<8x1xf32>
    %8 = tpu.concatenate %5, %7 in 1 : vector<8x1xf32>, vector<8x1xf32> -> vector<8x2xf32>
    %c0_4 = arith.constant 0 : index
    %c0_5 = arith.constant 0 : index
    %9 = vector.load %arg2[%c0_4, %c0_5] : memref<8x8xf32, #tpu.memory_space<vmem>>, vector<8x8xf32>
    %c0_6 = arith.constant 0 : index
    %c0_7 = arith.constant 0 : index
    %10 = vector.load %arg3[%c0_6, %c0_7] : memref<8x8xf32, #tpu.memory_space<vmem>>, vector<8x8xf32>
    %cst_8 = arith.constant dense<0.000000e+00> : vector<8x2xf32>
    %11 = tpu.matmul %9, %8, %cst_8 {dimension_numbers = #tpu.dot_dimension_numbers<[1], [0], [0], [1], [0, 0, 1, 1], [], []>} : vector<8x8xf32>, vector<8x2xf32>, vector<8x2xf32> -> vector<8x2xf32>
    %cst_9 = arith.constant 0.000000e+00 : f32
    %12 = vector.broadcast %cst_9 : f32 to vector<8x2xf32>
    %13 = arith.maximumf %11, %12 : vector<8x2xf32>
    %cst_10 = arith.constant dense<0.000000e+00> : vector<8x2xf32>
    %14 = tpu.matmul %10, %13, %cst_10 {dimension_numbers = #tpu.dot_dimension_numbers<[1], [0], [0], [1], [0, 0, 1, 1], [], []>} : vector<8x8xf32>, vector<8x2xf32>, vector<8x2xf32> -> vector<8x2xf32>
    %15 = vector.extract_strided_slice %14 {offsets = [0, 0], sizes = [8, 1], strides = [1, 1]} : vector<8x2xf32> to vector<8x1xf32>
    %16 = vector.extract_strided_slice %14 {offsets = [0, 1], sizes = [8, 1], strides = [1, 1]} : vector<8x2xf32> to vector<8x1xf32>
    %17 = arith.addf %15, %16 : vector<8x1xf32>
    %18 = arith.negf %17 : vector<8x1xf32>
    %19 = math.exp %18 : vector<8x1xf32>
    %cst_11 = arith.constant 1.000000e+00 : f32
    %20 = vector.broadcast %cst_11 : f32 to vector<8x1xf32>
    %21 = arith.addf %20, %19 : vector<8x1xf32>
    %22 = arith.divf %20, %21 : vector<8x1xf32>
    %23 = vector.broadcast %22 : vector<8x1xf32> to vector<8x256xf32>
    %24 = arith.mulf %23, %1 : vector<8x256xf32>
    %c0_12 = arith.constant 0 : index
    %c0_13 = arith.constant 0 : index
    %c0_14 = arith.constant 0 : index
    %25 = vector.load %arg4[%c0_12, %c0_13, %c0_14] : memref<1x8x256xf32, #tpu.memory_space<vmem>>, vector<1x8x256xf32>
    %26 = vector.shape_cast %25 : vector<1x8x256xf32> to vector<8x256xf32>
    %27 = vector.shape_cast %24 : vector<8x256xf32> to vector<1x8x256xf32>
    tpu.vector_store %arg4[%c0_12, %c0_13, %c0_14], %27 {strides = array<i32>} : memref<1x8x256xf32, #tpu.memory_space<vmem>>, vector<1x8x256xf32>,
    return
  }
  func.func @transform_0(%arg0: i32) -> (i32, i32, i32) {
    %c0_i32 = arith.constant 0 : i32
    %c0_i32_0 = arith.constant 0 : i32
    %c0_i32_1 = arith.constant 0 : i32
    return %arg0, %c0_i32, %c0_i32_0 : i32, i32, i32
  }
  func.func @transform_1(%arg0: i32) -> (i32, i32) {
    %c0_i32 = arith.constant 0 : i32
    %c0_i32_0 = arith.constant 0 : i32
    %c0_i32_1 = arith.constant 0 : i32
    return %c0_i32, %c0_i32_0 : i32, i32
  }
  func.func @transform_2(%arg0: i32) -> (i32, i32) {
    %c0_i32 = arith.constant 0 : i32
    %c0_i32_0 = arith.constant 0 : i32
    %c0_i32_1 = arith.constant 0 : i32
    return %c0_i32, %c0_i32_0 : i32, i32
  }
  func.func @transform_3(%arg0: i32) -> (i32, i32, i32) {
    %c0_i32 = arith.constant 0 : i32
    %c0_i32_0 = arith.constant 0 : i32
    %c0_i32_1 = arith.constant 0 : i32
    return %arg0, %c0_i32, %c0_i32_0 : i32, i32, i32
  }
}

</mosaic_0001>

<llo_original>
// kernel: tpu_custom_call.1
$region0: #{tpu_custom_call.1}
  #allocation0 [shape = 'u32[]', space=smem, size = 0x4, offset = 0x4, fixed_abs, tag = 'smem constant byte address 0x4 - core index']
  #allocation1 [shape = 'u32[144,128]{1,0:T(1,128)}', space=vmem, size = 0x12000, scoped, tag = 'internal scratch']
  %s0 = inlined_call_operand.hbm [shape: f32[2,8,256], index: 0, kind: input, shape index: {}]
  %s1 = inlined_call_operand.hbm [shape: f32[8,8], index: 1, kind: input, shape index: {}]
  %s2 = inlined_call_operand.hbm [shape: f32[8,8], index: 2, kind: input, shape index: {}]
  %s3 = inlined_call_operand.hbm [shape: f32[2,8,256], index: 3, kind: output, shape index: {}]
  %s4 = sld [smem:[#allocation0]]
  $region57: #{tpu_custom_call.1} parent=0
    _
  %s6 = ssub.s32 1, %s4
  %s7 = scalar_select 0, %s6, %s4
  $region1: #{tpu_custom_call.1} parent=0
    #allocation2 [shape = 'u8[16384]{0}', space=vmem, size = 0x4000, scoped, tag = 'input window, operand 0']
    #allocation3 [shape = 's32[2]{0}', space=sflag, size = 0x8, scoped, tag = 'scoped memory for tpu_custom_call.1']
    #allocation4 [shape = 's32[2]{0}', space=sflag, size = 0x8, scoped, tag = 'scoped memory for tpu_custom_call.1']
    #allocation5 [shape = 'u8[4096]{0}', space=vmem, size = 0x1000, scoped, tag = 'input window, operand 1, single buffered']
    #allocation6 [shape = 's32[1]{0}', space=sflag, size = 0x4, scoped, tag = 'scoped memory for tpu_custom_call.1']
    #allocation7 [shape = 'u8[4096]{0}', space=vmem, size = 0x1000, scoped, tag = 'input window, operand 2, single buffered']
    #allocation8 [shape = 'u8[16384]{0}', space=vmem, size = 0x4000, scoped, tag = 'output window, operand 0']
    %8 = vsyncpa [#allocation3], 0
    %s9 = scalar_lea.sflag [#allocation3], 1
    %10 = vsyncpa %s9, 0
    %11 = vsyncpa [#allocation6], 0
    %12 = vsyncpa [#allocation4], 0
    %s13 = scalar_lea.sflag [#allocation4], 1
    %14 = vsyncpa %s13, 0
    loop: start=0, step=1, limit=4
    $region2: #{tpu_custom_call.1} parent=1 // loop_pre_header
      _
    $region3: #{tpu_custom_call.1} parent=1 // loop_header
      %s16 = sphi 0, %s20
      %p17 = scmp.ge.s32.totalorder %s16, 4
      %s26 = sphi 0, %s28
      %s29 = sphi 0, %s26
      %s30 = sphi 0, %s29
      %s46 = sphi 0, %s30
      %s50 = sphi 0, %s50
      %s52 = sphi 0, %s50
      %s53 = sphi 0, %s52
      %s67 = sphi 0, %s53
      %s71 = sphi 0, %s71
      %s73 = sphi 0, %s71
      %s74 = sphi 0, %s73
      %s88 = sphi 0, %s74
      %s94 = sphi 0, %s96
      %s97 = sphi 0, %s94
      %s98 = sphi 0, %s97
      %s114 = sphi 0, %s98
    $region4: #{tpu_custom_call.1} parent=1 // loop_header_branch
      %19 = sbr.rel (%p17) target = $region8
    $region5: #{tpu_custom_call.1} parent=1 // loop_body
      %s21 = ssub.s32 %s16, 1
      %s22 = ssub.s32 %s16, 2
      %s23 = sadd.s32 %s16, 1
      %s24 = ssub.s32 %s16, %s23
      %p25 = scmp.eq.s32.totalorder %s24, 0
      %s27 = sadd.s32 %s26, 1
      %s28 = scalar_select %p25, %s26, %s27
      %p31 = pneg %p25
      %p32 = scmp.eq.s32.totalorder %s16, 1
      %p33 = por %p31, %p32
      %p34 = scmp.ne.s32.totalorder %s26, %s29
      %p35 = scmp.eq.s32.totalorder %s16, 0
      %p36 = por %p34, %p35
      %p37 = scmp.ne.s32.totalorder %s26, %s29
      %p38 = scmp.eq.s32.totalorder %s21, 1
      %p39 = por %p37, %p38
      %p40 = scmp.ne.s32.totalorder %s29, %s30
      %p41 = scmp.eq.s32.totalorder %s21, 0
      %p42 = por %p40, %p41
      %p43 = scmp.ne.s32.totalorder %s29, %s30
      %p44 = scmp.eq.s32.totalorder %s22, 1
      %p45 = por %p43, %p44
      %p47 = scmp.ne.s32.totalorder %s30, %s46
      %p48 = scmp.eq.s32.totalorder %s22, 0
      %p49 = por %p47, %p48
      %s51 = sadd.s32 %s50, 1
      %p54 = scmp.eq.s32.totalorder %s16, 1
      %p55 = scmp.ne.s32.totalorder %s50, %s52
      %p56 = scmp.eq.s32.totalorder %s16, 0
      %p57 = por %p55, %p56
      %p58 = scmp.ne.s32.totalorder %s50, %s52
      %p59 = scmp.eq.s32.totalorder %s21, 1
      %p60 = por %p58, %p59
      %p61 = scmp.ne.s32.totalorder %s52, %s53
      %p62 = scmp.eq.s32.totalorder %s21, 0
      %p63 = por %p61, %p62
      %p64 = scmp.ne.s32.totalorder %s52, %s53
      %p65 = scmp.eq.s32.totalorder %s22, 1
      %p66 = por %p64, %p65
      %p68 = scmp.ne.s32.totalorder %s53, %s67
      %p69 = scmp.eq.s32.totalorder %s22, 0
      %p70 = por %p68, %p69
      %s72 = sadd.s32 %s71, 1
      %p75 = scmp.eq.s32.totalorder %s16, 1
      %p76 = scmp.ne.s32.totalorder %s71, %s73
      %p77 = scmp.eq.s32.totalorder %s16, 0
      %p78 = por %p76, %p77
      %p79 = scmp.ne.s32.totalorder %s71, %s73
      %p80 = scmp.eq.s32.totalorder %s21, 1
      %p81 = por %p79, %p80
      %p82 = scmp.ne.s32.totalorder %s73, %s74
      %p83 = scmp.eq.s32.totalorder %s21, 0
      %p84 = por %p82, %p83
      %p85 = scmp.ne.s32.totalorder %s73, %s74
      %p86 = scmp.eq.s32.totalorder %s22, 1
      %p87 = por %p85, %p86
      %p89 = scmp.ne.s32.totalorder %s74, %s88
      %p90 = scmp.eq.s32.totalorder %s22, 0
      %p91 = por %p89, %p90
      %s92 = ssub.s32 %s16, %s23
      %p93 = scmp.eq.s32.totalorder %s92, 0
      %s95 = sadd.s32 %s94, 1
      %s96 = scalar_select %p93, %s94, %s95
      %p99 = pneg %p93
      %p100 = scmp.eq.s32.totalorder %s16, 1
      %p101 = por %p99, %p100
      %p102 = scmp.ne.s32.totalorder %s94, %s97
      %p103 = scmp.eq.s32.totalorder %s16, 0
      %p104 = por %p102, %p103
      %p105 = scmp.ne.s32.totalorder %s94, %s97
      %p106 = scmp.eq.s32.totalorder %s21, 1
      %p107 = por %p105, %p106
      %p108 = scmp.ne.s32.totalorder %s97, %s98
      %p109 = scmp.eq.s32.totalorder %s21, 0
      %p110 = por %p108, %p109
      %p111 = scmp.ne.s32.totalorder %s97, %s98
      %p112 = scmp.eq.s32.totalorder %s22, 1
      %p113 = por %p111, %p112
      %p115 = scmp.ne.s32.totalorder %s98, %s114
      %p116 = scmp.eq.s32.totalorder %s22, 0
      %p117 = por %p115, %p116
      %p118 = scmp.le.s32.totalorder 1, %s16
      %p119 = scmp.lt.s32.totalorder %s16, 3
      %p120 = pnand %p118, %p119
      %p121 = pneg %p120
      // Predicated region
      $region9: #{tpu_custom_call.1} parent=5 // pred_check
        _
      $region10: #{tpu_custom_call.1} parent=5 // pred_check_branch
        %123 = sbr.rel (%p120) target = $region12
      $region11: #{tpu_custom_call.1} parent=5 // pred_region
        %s124 = ssub.s32 %s16, 1
        // Predicated region
        $region13: #{tpu_custom_call.1} parent=11 // pred_check
          %p125 = pneg %p63
        $region14: #{tpu_custom_call.1} parent=11 // pred_check_branch
          %127 = sbr.rel (%p125) target = $region16
        $region15: #{tpu_custom_call.1} parent=11 // pred_region
          %s129 = ssub.s32 128, 128
          %130 = vsyncadd [#allocation6], %s129
          %s132 = sshll.u32 [#allocation5], 4
          %s133 = int_to_ptr.vmem [resolvable:$true] %s132
          %135 = dma.hbm_to_vmem [thread:$0]  %s1, 128, %s133, [#allocation6]
        $region16: #{tpu_custom_call.1} parent=11 // pred_fallthru
          _
        // Predicated region
        $region17: #{tpu_custom_call.1} parent=11 // pred_check
          %p136 = pneg %p84
        $region18: #{tpu_custom_call.1} parent=11 // pred_check_branch
          %138 = sbr.rel (%p136) target = $region20
        $region19: #{tpu_custom_call.1} parent=11 // pred_region
          %s140 = ssub.s32 128, 128
          %141 = vsyncadd [#allocation6], %s140
          %s143 = sshll.u32 [#allocation7], 4
          %s144 = int_to_ptr.vmem [resolvable:$true] %s143
          %146 = dma.hbm_to_vmem [thread:$0]  %s2, 128, %s144, [#allocation6]
        $region20: #{tpu_custom_call.1} parent=11 // pred_fallthru
          _
      $region12: #{tpu_custom_call.1} parent=5 // pred_fallthru
        _
      %p147 = scmp.lt.s32.totalorder %s16, 2
      // Predicated region
      $region21: #{tpu_custom_call.1} parent=5 // pred_check
        %p148 = pneg %p147
      $region22: #{tpu_custom_call.1} parent=5 // pred_check_branch
        %150 = sbr.rel (%p148) target = $region24
      $region23: #{tpu_custom_call.1} parent=5 // pred_region
        // Predicated region
        $region25: #{tpu_custom_call.1} parent=23 // pred_check
          %p151 = pneg %p36
        $region26: #{tpu_custom_call.1} parent=23 // pred_check_branch
          %153 = sbr.rel (%p151) target = $region28
        $region27: #{tpu_custom_call.1} parent=23 // pred_region
          %s154 = sand.u32 %s26, 1
          %s155 = scalar_lea.sflag [#allocation3], %s154
          %s156 = sand.u32 %s26, 1
          %s157 = smul.addr %s156, 16
          %s158 = scalar_lea.vmem [#allocation2], %s157
          %s160 = ssub.s32 256, 256
          %161 = vsyncadd %s155, %s160
          %s162 = smul.addr %s16, 2
          %s163 = smul.addr %s162, 128
          %s164 = scalar_lea.hbm %s0, %s163
          %s166 = sshll.u32 %s158, 4
          %s167 = int_to_ptr.vmem [resolvable:$true] %s166
          %169 = dma.hbm_to_vmem [thread:$0]  %s164, 256, %s167, %s155
        $region28: #{tpu_custom_call.1} parent=23 // pred_fallthru
          _
      $region24: #{tpu_custom_call.1} parent=5 // pred_fallthru
        _
      %p170 = scmp.le.s32.totalorder 1, %s16
      %p171 = scmp.lt.s32.totalorder %s16, 3
      %p172 = pnand %p170, %p171
      %p173 = pneg %p172
      // Predicated region
      $region29: #{tpu_custom_call.1} parent=5 // pred_check
        _
      $region30: #{tpu_custom_call.1} parent=5 // pred_check_branch
        %175 = sbr.rel (%p172) target = $region32
      $region31: #{tpu_custom_call.1} parent=5 // pred_region
        %s176 = ssub.s32 %s16, 1
        %s177 = sand.u32 %s29, 1
        %s178 = scalar_lea.sflag [#allocation3], %s177
        %s179 = sand.u32 %s29, 1
        %s180 = smul.addr %s179, 16
        %s181 = scalar_lea.vmem [#allocation2], %s180
        // Predicated region
        $region33: #{tpu_custom_call.1} parent=31 // pred_check
          %p182 = pneg %p42
        $region34: #{tpu_custom_call.1} parent=31 // pred_check_branch
          %184 = sbr.rel (%p182) target = $region36
        $region35: #{tpu_custom_call.1} parent=31 // pred_region
          %185 = dma.done %s178, 256
        $region36: #{tpu_custom_call.1} parent=31 // pred_fallthru
          _
        // Predicated region
        $region37: #{tpu_custom_call.1} parent=31 // pred_check
          %p186 = pneg %p63
        $region38: #{tpu_custom_call.1} parent=31 // pred_check_branch
          %188 = sbr.rel (%p186) target = $region40
        $region39: #{tpu_custom_call.1} parent=31 // pred_region
          %189 = dma.done [#allocation6], 128
        $region40: #{tpu_custom_call.1} parent=31 // pred_fallthru
          _
        // Predicated region
        $region41: #{tpu_custom_call.1} parent=31 // pred_check
          %p190 = pneg %p84
        $region42: #{tpu_custom_call.1} parent=31 // pred_check_branch
          %192 = sbr.rel (%p190) target = $region44
        $region43: #{tpu_custom_call.1} parent=31 // pred_region
          %193 = dma.done [#allocation6], 128
        $region44: #{tpu_custom_call.1} parent=31 // pred_fallthru
          _
        %s194 = sand.u32 %s29, 1
        %s195 = scalar_lea.sflag [#allocation3], %s194
        %s196 = sand.u32 %s29, 1
        %s197 = smul.addr %s196, 16
        %s198 = scalar_lea.vmem [#allocation2], %s197
        %p199 = pneg %p42
        %p200 = pneg %p39
        %p201 = pneg %p63
        %p202 = pneg %p60
        %p203 = pneg %p84
        %p204 = pneg %p81
        %p205 = pneg %p110
        %p206 = pneg %p107
        %s207 = sand.u32 %s97, 1
        %s208 = scalar_lea.sflag [#allocation4], %s207
        %s209 = sand.u32 %s97, 1
        %s210 = smul.addr %s209, 16
        %s211 = scalar_lea.vmem [#allocation8], %s210
        %v212 = vld [vmem:[%s181] sm:$0xff]
        %v213 = vld [vmem:[%s181 + $0x8] sm:$0xff]
        %v214 = vadd.f32 %v212, %v213
        %215 = vadd.xlane.f32.xlu0 %v214
        %v216 = vpop.xlane.xlu0 %215
        %v217 = vmul.f32 %v216, 0.00390625
        %v218 = vmax.f32 %v212, %v213
        %219 = vmax.xlane.f32.xlu0 %v218
        %v220 = vpop.xlane.xlu0 %219
        %vm221 = vcmask 7168
        %v222 = vsel %vm221, %v217, %v220
        %v223 = vld [vmem:[#allocation5] sm:$0xff]
        %v224 = vld [vmem:[#allocation7] sm:$0xff]
        %vm225 = vcmask 64512
        %v227 = vsel %vm225, %v223, 0
        %229 = vmatprep.subr.mxu0 0.0
        %230 = vmatpush1.msra.mxu0 %v222
        %231 = vmatprep.subr.mxu0 0.0
        %232 = vmatpush1.msra.mxu0 0.0
        %233 = vmatprep.subr.mxu0 0.0
        %234 = vmatpush1.msra.mxu0 0.0
        %235 = vmatprep.subr.mxu0 0.0
        %236 = vmatpush1.msra.mxu0 0.0
        %237 = vmatprep.subr.mxu0 0.0
        %238 = vmatpush1.msra.mxu0 0.0
        %239 = vmatprep.subr.mxu0 0.0
        %240 = vmatpush1.msra.mxu0 0.0
        %241 = vmatprep.subr.mxu0 0.0
        %242 = vmatpush1.msra.mxu0 0.0
        %243 = vmatprep.subr.mxu0 0.0
        %244 = vmatpush1.msra.mxu0 0.0
        %245 = vmatprep.subr.mxu0 0.0
        %246 = vmatpush1.msra.mxu0 0.0
        %247 = vmatprep.subr.mxu0 0.0
        %248 = vmatpush1.msra.mxu0 0.0
        %249 = vmatprep.subr.mxu0 0.0
        %250 = vmatpush1.msra.mxu0 0.0
        %251 = vmatprep.subr.mxu0 0.0
        %252 = vmatpush1.msra.mxu0 0.0
        %253 = vmatprep.subr.mxu0 0.0
        %254 = vmatpush1.msra.mxu0 0.0
        %255 = vmatprep.subr.mxu0 0.0
        %256 = vmatpush1.msra.mxu0 0.0
        %257 = vmatprep.subr.mxu0 0.0
        %258 = vmatpush1.msra.mxu0 0.0
        %259 = vmatprep.subr.mxu0 0.0
        %260 = vmatpush1.msra.mxu0 0.0
        %261 = vmatprep.subr.mxu0 0.0
        %262 = vmatpush1.msra.mxu0 0.0
        %263 = vmatprep.subr.mxu0 0.0
        %264 = vmatpush1.msra.mxu0 0.0
        %265 = vmatprep.subr.mxu0 0.0
        %266 = vmatpush1.msra.mxu0 0.0
        %267 = vmatprep.subr.mxu0 0.0
        %268 = vmatpush1.msra.mxu0 0.0
        %269 = vmatprep.subr.mxu0 0.0
        %270 = vmatpush1.msra.mxu0 0.0
        %271 = vmatprep.subr.mxu0 0.0
        %272 = vmatpush1.msra.mxu0 0.0
        %273 = vmatprep.subr.mxu0 0.0
        %274 = vmatpush1.msra.mxu0 0.0
        %275 = vmatprep.subr.mxu0 0.0
        %276 = vmatpush1.msra.mxu0 0.0
        %277 = vmatprep.subr.mxu0 0.0
        %278 = vmatpush1.msra.mxu0 0.0
        %279 = vmatprep.subr.mxu0 0.0
        %280 = vmatpush1.msra.mxu0 0.0
        %281 = vmatprep.subr.mxu0 0.0
        %282 = vmatpush1.msra.mxu0 0.0
        %283 = vmatprep.subr.mxu0 0.0
        %284 = vmatpush1.msra.mxu0 0.0
        %285 = vmatprep.subr.mxu0 0.0
        %286 = vmatpush1.msra.mxu0 0.0
        %287 = vmatprep.subr.mxu0 0.0
        %288 = vmatpush1.msra.mxu0 0.0
        %289 = vmatprep.subr.mxu0 0.0
        %290 = vmatpush1.msra.mxu0 0.0
        %291 = vmatprep.subr.mxu0 0.0
        %292 = vmatpush1.msra.mxu0 0.0
        %293 = vmatprep.mubr.f32.mxu0 0.0
        %294 = vmatmul.mubr.f32.gmra.mrb[0].mxu0 %v227
        %v295 = vpop.f32.mrb[0].mxu0
        %v296 = vadd.f32 0.0, %v295
        %v297 = vpop.f32.mrb[0].mxu0
        %298 = vdwg.mxu0
        %v299 = vmax.f32 %v296, 0.0
        %v301 = vsel %vm225, %v224, 0
        %303 = vmatprep.subr.mxu0 0.0
        %304 = vmatpush1.msra.mxu0 %v299
        %305 = vmatprep.subr.mxu0 0.0
        %306 = vmatpush1.msra.mxu0 0.0
        %307 = vmatprep.subr.mxu0 0.0
        %308 = vmatpush1.msra.mxu0 0.0
        %309 = vmatprep.subr.mxu0 0.0
        %310 = vmatpush1.msra.mxu0 0.0
        %311 = vmatprep.subr.mxu0 0.0
        %312 = vmatpush1.msra.mxu0 0.0
        %313 = vmatprep.subr.mxu0 0.0
        %314 = vmatpush1.msra.mxu0 0.0
        %315 = vmatprep.subr.mxu0 0.0
        %316 = vmatpush1.msra.mxu0 0.0
        %317 = vmatprep.subr.mxu0 0.0
        %318 = vmatpush1.msra.mxu0 0.0
        %319 = vmatprep.subr.mxu0 0.0
        %320 = vmatpush1.msra.mxu0 0.0
        %321 = vmatprep.subr.mxu0 0.0
        %322 = vmatpush1.msra.mxu0 0.0
        %323 = vmatprep.subr.mxu0 0.0
        %324 = vmatpush1.msra.mxu0 0.0
        %325 = vmatprep.subr.mxu0 0.0
        %326 = vmatpush1.msra.mxu0 0.0
        %327 = vmatprep.subr.mxu0 0.0
        %328 = vmatpush1.msra.mxu0 0.0
        %329 = vmatprep.subr.mxu0 0.0
        %330 = vmatpush1.msra.mxu0 0.0
        %331 = vmatprep.subr.mxu0 0.0
        %332 = vmatpush1.msra.mxu0 0.0
        %333 = vmatprep.subr.mxu0 0.0
        %334 = vmatpush1.msra.mxu0 0.0
        %335 = vmatprep.subr.mxu0 0.0
        %336 = vmatpush1.msra.mxu0 0.0
        %337 = vmatprep.subr.mxu0 0.0
        %338 = vmatpush1.msra.mxu0 0.0
        %339 = vmatprep.subr.mxu0 0.0
        %340 = vmatpush1.msra.mxu0 0.0
        %341 = vmatprep.subr.mxu0 0.0
        %342 = vmatpush1.msra.mxu0 0.0
        %343 = vmatprep.subr.mxu0 0.0
        %344 = vmatpush1.msra.mxu0 0.0
        %345 = vmatprep.subr.mxu0 0.0
        %346 = vmatpush1.msra.mxu0 0.0
        %347 = vmatprep.subr.mxu0 0.0
        %348 = vmatpush1.msra.mxu0 0.0
        %349 = vmatprep.subr.mxu0 0.0
        %350 = vmatpush1.msra.mxu0 0.0
        %351 = vmatprep.subr.mxu0 0.0
        %352 = vmatpush1.msra.mxu0 0.0
        %353 = vmatprep.subr.mxu0 0.0
        %354 = vmatpush1.msra.mxu0 0.0
        %355 = vmatprep.subr.mxu0 0.0
        %356 = vmatpush1.msra.mxu0 0.0
        %357 = vmatprep.subr.mxu0 0.0
        %358 = vmatpush1.msra.mxu0 0.0
        %359 = vmatprep.subr.mxu0 0.0
        %360 = vmatpush1.msra.mxu0 0.0
        %361 = vmatprep.subr.mxu0 0.0
        %362 = vmatpush1.msra.mxu0 0.0
        %363 = vmatprep.subr.mxu0 0.0
        %364 = vmatpush1.msra.mxu0 0.0
        %365 = vmatprep.subr.mxu0 0.0
        %366 = vmatpush1.msra.mxu0 0.0
        %367 = vmatprep.mubr.f32.mxu0 0.0
        %368 = vmatmul.mubr.f32.gmra.mrb[0].mxu0 %v301
        %v369 = vpop.f32.mrb[0].mxu0
        %v370 = vadd.f32 0.0, %v369
        %v371 = vpop.f32.mrb[0].mxu0
        %372 = vdwg.mxu0
        %374 = vrot.lane.b32.xlu0 %v370, 127
        %v375 = vpop.permute.xlu0 %374
        %v377 = vadd.f32 %v370, %v375
        %v378 = vxor.u32 %v377, 2147483648
        %v379 = vmul.f32 %v378, 1.442695
        %v380 = vpow.pop %v379
        %v381 = vadd.f32 %v380, 1.0
        %v382 = vrcp.pop %v381
        %v383 = vmul.f32 1.0, %v382
        %385 = vset.pattern.permute.xlu0 0
        %386 = vperm.xlu0 %385, %v383
        %v387 = vpop.permute.xlu0 %386
        %v389 = vmul.f32 %v387, %v212
        %v390 = vmul.f32 %v387, %v213
        %391 = vst [vmem:[%s211] sm:$0xff] %v389
        %392 = vst [vmem:[%s211 + $0x8] sm:$0xff] %v390
        %s393 = sand.u32 %s97, 1
        %s394 = scalar_lea.sflag [#allocation4], %s393
        %s395 = sand.u32 %s97, 1
        %s396 = smul.addr %s395, 16
        %s397 = scalar_lea.vmem [#allocation8], %s396
        // Predicated region
        $region45: #{tpu_custom_call.1} parent=31 // pred_check
          %p398 = pneg %p107
        $region46: #{tpu_custom_call.1} parent=31 // pred_check_branch
          %400 = sbr.rel (%p398) target = $region48
        $region47: #{tpu_custom_call.1} parent=31 // pred_region
          %s402 = ssub.s32 256, 256
          %403 = vsyncadd %s394, %s402
          %s404 = smul.addr %s21, 2
          %s405 = smul.addr %s404, 128
          %s406 = scalar_lea.hbm %s3, %s405
          %s408 = sshll.u32 %s397, 4
          %s409 = int_to_ptr.vmem [resolvable:$true] %s408
          %411 = dma.vmem_to_hbm [thread:$0]  %s409, 256, %s406, %s394
        $region48: #{tpu_custom_call.1} parent=31 // pred_fallthru
          _
      $region32: #{tpu_custom_call.1} parent=5 // pred_fallthru
        _
      %p412 = scmp.le.s32.totalorder 2, %s16
      // Predicated region
      $region49: #{tpu_custom_call.1} parent=5 // pred_check
        %p413 = pneg %p412
      $region50: #{tpu_custom_call.1} parent=5 // pred_check_branch
        %415 = sbr.rel (%p413) target = $region52
      $region51: #{tpu_custom_call.1} parent=5 // pred_region
        %s416 = ssub.s32 %s16, 2
        // Predicated region
        $region53: #{tpu_custom_call.1} parent=51 // pred_check
          %p417 = pneg %p113
        $region54: #{tpu_custom_call.1} parent=51 // pred_check_branch
          %419 = sbr.rel (%p417) target = $region56
        $region55: #{tpu_custom_call.1} parent=51 // pred_region
          %s420 = sand.u32 %s98, 1
          %s421 = scalar_lea.sflag [#allocation4], %s420
          %s422 = sand.u32 %s98, 1
          %s423 = smul.addr %s422, 16
          %s424 = scalar_lea.vmem [#allocation8], %s423
          %425 = dma.done %s421, 256
        $region56: #{tpu_custom_call.1} parent=51 // pred_fallthru
          _
      $region52: #{tpu_custom_call.1} parent=5 // pred_fallthru
        _
    $region6: #{tpu_custom_call.1} parent=1 // loop_footer
      %s20 = sadd.s32 1, %s16
    $region7: #{tpu_custom_call.1} parent=1 // loop_footer_branch
      %15 = sbr.rel target = $region3
    $region8: #{tpu_custom_call.1} parent=1 // loop_exit
      _
    %426 = vsyncpa [#allocation3], 1
    %s427 = scalar_lea.sflag [#allocation3], 1
    %428 = vsyncpa %s427, 1
    %429 = vsyncpa [#allocation6], 1
    %430 = vsyncpa [#allocation4], 1
    %s431 = scalar_lea.sflag [#allocation4], 1
    %432 = vsyncpa %s431, 1

</llo_original>
